<compile_context>
chip_gen: v7x
topology: tpu7x:2x2x1
jax: 0.10.0
libtpu: 0.0.40
codegen_flags: <defaults>
</compile_context>

<pallas_src>
import functools
import math

import jax
import jax.numpy as jnp
from jax import lax
from jax.experimental import pallas as pl
from jax.experimental.pallas import tpu as pltpu

_VMEM_SLACK = 4 << 20  # compiler / pipeline bookkeeping headroom


def _residual_linear_kernel(x_ref, w_ref, b_ref, o_ref, *scratch, mxu_dtype):
    # x_ref: (tm, H)   activation row tile (full hidden dim on lanes)
    # w_ref: (tn, H)   weight slice, PyTorch (out_features, in_features) layout
    # b_ref: (1, tn)   bias slice
    # o_ref: (tm, tn)  output tile = x[:, cols] + x @ w_slice^T + b_slice
    # scratch (bf16 path only): (tn, H) mxu_dtype copy of the weight slice.
    H = x_ref.shape[-1]
    tn = o_ref.shape[-1]

    x_val = x_ref[...]

    if mxu_dtype is not None:
        (w_cast_ref,) = scratch

        # The weight slice only changes with the OUTER (column) grid axis, so
        # cast it once per column tile (first row step) instead of every step.
        @pl.when(pl.program_id(1) == 0)
        def _():
            w_cast_ref[...] = w_ref[...].astype(mxu_dtype)

        x_mxu = x_val.astype(mxu_dtype)
        w_mxu = w_cast_ref[...]
    else:
        x_mxu = x_val
        w_mxu = w_ref[...]

    # y[m, o] = sum_k x[m, k] * w[o, k]  ==  (x @ W^T)[m, o]; contracting on
    # w's second axis avoids any transpose of the weights (HBM or in-kernel).
    y = lax.dot_general(
        x_mxu,
        w_mxu,
        dimension_numbers=(((1,), (1,)), ((), ())),
        preferred_element_type=jnp.float32,
    )

    # Residual term: matching column slice of the input row tile.  When the
    # whole W is resident (tn == H) this is simply the already-loaded block.
    if tn == H:
        x_res = x_val.astype(jnp.float32)
    else:
        col0 = pl.multiple_of(pl.program_id(0) * tn, 128)
        x_res = x_ref[:, pl.ds(col0, tn)].astype(jnp.float32)

    o_ref[...] = (x_res + y + b_ref[...].astype(jnp.float32)).astype(o_ref.dtype)


def _vmem_budget_bytes():
    """Per-generation scoped-VMEM budget (leaves headroom for the compiler)."""
    cap = None
    try:
        info = pltpu.get_tpu_info()
        cap = getattr(info, "vmem_capacity_bytes", None)
    except Exception:
        cap = None
    if not cap:
        cap = 64 << 20  # conservative default: v7x-sized VMEM
    budget = min(cap - (16 << 20), 100 << 20)  # v5e/v6e ~100 MiB, v7x ~48 MiB
    return int(max(budget, 32 << 20))


def _estimate_vmem(tm, tn, H, elem, mxu_elem, x_buffers):
    """VMEM footprint including in-kernel temporaries (bf16 copies, f32 dot)."""
    est = x_buffers * tm * H * elem       # pipelined activation tiles
    est += 2 * tn * H * elem              # weight slice (double-buffered)
    est += 2 * tn * elem                  # bias slice
    est += 2 * tm * tn * elem             # pipelined output tiles
    est += 2 * tm * tn * 4                # f32 dot result + f32 epilogue temp
    if mxu_elem is not None:
        est += tn * H * mxu_elem          # hoisted low-precision weight scratch
        est += tm * H * mxu_elem          # per-step low-precision x copy
    return est


def _pick_tiles(m_aligned, H, elem, mxu_elem, budget, *, tm_max, tn_max):
    """Pick (tm, tn): prefer the LARGEST tn (fewest x re-reads), then tm."""
    tm_top = max(8, min(tm_max, m_aligned))
    tm_cands = sorted(
        {t for t in (tm_top, 256, 128, 64, 32, 16, 8) if 8 <= t <= tm_top},
        reverse=True,
    )
    tn_max = max(128, min(tn_max, H))
    tn_cands = [t for t in range(H, 0, -128) if H % t == 0 and t <= tn_max]
    if not tn_cands:
        return None
    for tm_floor in (min(128, tm_top), 8):
        for tn in tn_cands:
            for tm in tm_cands:
                if tm < tm_floor:
                    continue
                if _estimate_vmem(tm, tn, H, elem, mxu_elem, 2) + _VMEM_SLACK <= budget:
                    return tm, tn
    return None


def residual_linear(x, w, b, *, tm_max=256, tn_max=None, mxu_dtype=None):
    """x + (x @ w.T + b), fused in a Pallas TPU kernel.

    x: (..., H)   activations
    w: (H, H)     PyTorch-style Linear weight (out_features, in_features)
    b: (H,)       bias
    mxu_dtype:    e.g. jnp.bfloat16 to run the matmul in bf16 (beneficial on
                  ALL generations, v5e included; accumulation and the
                  residual/bias add stay f32).
    """
    H = x.shape[-1]
    M = math.prod(x.shape[:-1]) if x.ndim > 1 else 1

    if H % 128 != 0:
        # Lane-sparse hidden dims (e.g. H=32) make a Pallas kernel pure
        # overhead (masked vst.msk stores, tiny MXU tiles); use plain XLA.
        return x + (jnp.einsum("...h,oh->...o", x, w) + b)

    elem = jnp.dtype(x.dtype).itemsize
    mxu_elem = None if mxu_dtype is None else jnp.dtype(mxu_dtype).itemsize
    budget = _vmem_budget_bytes()

    m_aligned = max(8, ((M + 7) // 8) * 8)
    tiles = _pick_tiles(
        m_aligned, H, elem, mxu_elem, budget,
        tm_max=tm_max, tn_max=(H if tn_max is None else tn_max),
    )
    if tiles is None:
        # No tile combination fits VMEM (extremely large H): XLA fallback.
        return x + (jnp.einsum("...h,oh->...o", x, w) + b)
    tm_eff, tn_eff = tiles

    m_pad = ((M + tm_eff - 1) // tm_eff) * tm_eff
    x2 = x.reshape(M, H)
    if m_pad != M:
        x2 = jnp.pad(x2, ((0, m_pad - M), (0, 0)))
    b2 = b.reshape(1, H)

    col_steps = H // tn_eff
    row_steps = m_pad // tm_eff
    grid = (col_steps, row_steps)  # columns outer -> weight slice stays resident

    # Deepen pipelining on the activation stream only when it can help
    # (enough row steps) and there is VMEM headroom for a third buffer.
    x_buffers = 2
    if (row_steps >= 3
            and _estimate_vmem(tm_eff, tn_eff, H, elem, mxu_elem, 3) + _VMEM_SLACK
            <= budget):
        x_buffers = 3
    x_spec_kwargs = {"pipeline_mode": pl.Buffered(x_buffers)} if x_buffers > 2 else {}

    # Advisory cost: bytes reflect the true activation re-read factor (H/tn).
    cost = pl.CostEstimate(
        flops=2 * m_pad * H * H,
        transcendentals=0,
        bytes_accessed=elem * (col_steps * m_pad * H + H * H + m_pad * H + H),
    )

    scratch_shapes = []
    if mxu_dtype is not None:
        scratch_shapes.append(pltpu.VMEM((tn_eff, H), mxu_dtype))

    kernel = functools.partial(_residual_linear_kernel, mxu_dtype=mxu_dtype)

    # bf16 path carries scratch state across the inner (row) axis, so mark it
    # "arbitrary"; measured impact of parallel vs arbitrary is near-zero.
    dims = ("parallel", "parallel") if mxu_dtype is None else ("parallel", "arbitrary")

    out2 = pl.pallas_call(
        kernel,
        out_shape=jax.ShapeDtypeStruct((m_pad, H), x.dtype),
        grid_spec=pltpu.PrefetchScalarGridSpec(
            num_scalar_prefetch=0,
            grid=grid,
            in_specs=[
                # Activations: full hidden dim per row tile (needed for the
                # contraction); streamed along the inner (row) axis.
                pl.BlockSpec((tm_eff, H), lambda j, i: (i, 0), **x_spec_kwargs),
                # Weight slice: depends only on the outer (column) axis, so it
                # stays resident across the whole row sweep (read once total).
                pl.BlockSpec((tn_eff, H), lambda j, i: (j, 0)),
                # Bias slice.
                pl.BlockSpec((1, tn_eff), lambda j, i: (0, j)),
            ],
            out_specs=pl.BlockSpec((tm_eff, tn_eff), lambda j, i: (i, j)),
            scratch_shapes=scratch_shapes,
        ),
        compiler_params=pltpu.CompilerParams(
            dimension_semantics=dims,
            vmem_limit_bytes=int(budget),
        ),
        cost_estimate=cost,
    )(x2, w, b2)

    return out2[:M].reshape(x.shape)


if __name__ == "__main__":
    # Small but lane-dense shapes: batch=2, seq=8, hidden=256 (H % 128 == 0 so
    # the Pallas path is exercised; tiny H like 32 would take the XLA fallback).
    B, S, H = 2, 8, 256

    key = jax.random.PRNGKey(0)
    kx, kw, kb = jax.random.split(key, 3)

    x = jax.random.normal(kx, (B, S, H), dtype=jnp.float32)
    # Deterministic synthetic parameters mirroring nn.Linear(H, H).
    w = jax.random.normal(kw, (H, H), dtype=jnp.float32) * (1.0 / jnp.sqrt(H))
    b = jax.random.normal(kb, (H,), dtype=jnp.float32) * 0.01

    # Reference: x + (x @ W^T + b)
    ref = x + (
        jnp.einsum("bsh,oh->bso", x, w, precision=jax.lax.Precision.HIGHEST) + b
    )

    # 1) f32 path, full-W-resident (tn == H): x read from HBM exactly once.
    out = jax.block_until_ready(residual_linear(x, w, b))
    assert out.shape == ref.shape
    assert jnp.allclose(out, ref, atol=1e-4, rtol=1e-4), "f32 full-W mismatch"

    # 2) f32 path with a forced smaller column tile (tn < H) to exercise the
    #    sliced-residual / multi-column-tile code path.
    out_t = jax.block_until_ready(residual_linear(x, w, b, tn_max=128))
    assert jnp.allclose(out_t, ref, atol=1e-4, rtol=1e-4), "f32 tiled mismatch"

    # 3) bf16 MXU path (hoisted weight cast into VMEM scratch); f32 accumulate,
    #    looser tolerance due to bf16 operand rounding.
    out_bf = jax.block_until_ready(residual_linear(x, w, b, mxu_dtype=jnp.bfloat16))
    assert jnp.allclose(out_bf, ref, atol=1e-1, rtol=1e-1), "bf16 path mismatch"

    print("KERNEL_OK")
</pallas_src>

<mosaic_0001>
module attributes {stable_mosaic.version = 11 : i64} {
  func.func @_residual_linear_kernel(%arg0: i32, %arg1: i32, %arg2: memref<16x256xf32, #tpu.memory_space<vmem>>, %arg3: memref<256x256xf32, #tpu.memory_space<vmem>>, %arg4: memref<1x256xf32, #tpu.memory_space<vmem>>, %arg5: memref<16x256xf32, #tpu.memory_space<vmem>>) attributes {dimension_semantics = [#tpu.dimension_semantics<parallel>, #tpu.dimension_semantics<parallel>], iteration_bounds = array<i64: 1, 1>, scalar_prefetch = 0 : i64, scratch_operands = 0 : i64, tpu.core_type = #tpu.core_type<tc>, window_params = [{transform_indices = @transform_0, window_bounds = array<i64: 16, 256>}, {transform_indices = @transform_1, window_bounds = array<i64: 256, 256>}, {transform_indices = @transform_2, window_bounds = array<i64: 1, 256>}, {transform_indices = @transform_3, window_bounds = array<i64: 16, 256>}]} {
    %c0 = arith.constant 0 : index
    %c0_0 = arith.constant 0 : index
    %0 = vector.load %arg2[%c0, %c0_0] : memref<16x256xf32, #tpu.memory_space<vmem>>, vector<16x256xf32>
    %c0_1 = arith.constant 0 : index
    %c0_2 = arith.constant 0 : index
    %1 = vector.load %arg3[%c0_1, %c0_2] : memref<256x256xf32, #tpu.memory_space<vmem>>, vector<256x256xf32>
    %cst = arith.constant dense<0.000000e+00> : vector<16x256xf32>
    %2 = tpu.matmul %0, %1, %cst {dimension_numbers = #tpu.dot_dimension_numbers<[1], [1], [0], [0], [0, 0, 1, 0], [], []>} : vector<16x256xf32>, vector<256x256xf32>, vector<16x256xf32> -> vector<16x256xf32>
    %3 = arith.addf %0, %2 : vector<16x256xf32>
    %c0_3 = arith.constant 0 : index
    %c0_4 = arith.constant 0 : index
    %4 = vector.load %arg4[%c0_3, %c0_4] : memref<1x256xf32, #tpu.memory_space<vmem>>, vector<1x256xf32>
    %5 = vector.broadcast %4 : vector<1x256xf32> to vector<16x256xf32>
    %6 = arith.addf %3, %5 : vector<16x256xf32>
    %c0_5 = arith.constant 0 : index
    %c0_6 = arith.constant 0 : index
    %7 = vector.load %arg5[%c0_5, %c0_6] : memref<16x256xf32, #tpu.memory_space<vmem>>, vector<16x256xf32>
    tpu.vector_store %arg5[%c0_5, %c0_6], %6 {strides = array<i32>} : memref<16x256xf32, #tpu.memory_space<vmem>>, vector<16x256xf32>,
    return
  }
  func.func @transform_0(%arg0: i32, %arg1: i32) -> (i32, i32) {
    %c0_i32 = arith.constant 0 : i32
    %c0_i32_0 = arith.constant 0 : i32
    return %arg1, %c0_i32 : i32, i32
  }
  func.func @transform_1(%arg0: i32, %arg1: i32) -> (i32, i32) {
    %c0_i32 = arith.constant 0 : i32
    %c0_i32_0 = arith.constant 0 : i32
    return %arg0, %c0_i32 : i32, i32
  }
  func.func @transform_2(%arg0: i32, %arg1: i32) -> (i32, i32) {
    %c0_i32 = arith.constant 0 : i32
    %c0_i32_0 = arith.constant 0 : i32
    return %c0_i32, %arg0 : i32, i32
  }
  func.func @transform_3(%arg0: i32, %arg1: i32) -> (i32, i32) {
    %c0_i32 = arith.constant 0 : i32
    return %arg1, %arg0 : i32, i32
  }
}

</mosaic_0001>

<llo_original>
// kernel: tpu_custom_call.1
$region0: #{tpu_custom_call.1}
  #allocation0 [shape = 'u32[]', space=smem, size = 0x4, offset = 0x4, fixed_abs, tag = 'smem constant byte address 0x4 - core index']
  #allocation1 [shape = 'u32[144,128]{1,0:T(1,128)}', space=vmem, size = 0x12000, scoped, tag = 'internal scratch']
  %s0 = inlined_call_operand.hbm [shape: f32[16,256], index: 0, kind: input, shape index: {}]
  %s1 = inlined_call_operand.hbm [shape: f32[256,256], index: 1, kind: input, shape index: {}]
  %s2 = inlined_call_operand.vmem [shape: f32[1,256], index: 2, kind: input, shape index: {}]
  %s3 = inlined_call_operand.hbm [shape: f32[16,256], index: 3, kind: output, shape index: {}]
  %s4 = sld [smem:[#allocation0]]
  $region30: #{tpu_custom_call.1} parent=0
    _
  %s6 = ssub.s32 1, %s4
  %s7 = scalar_select 0, %s6, %s4
  $region1: #{tpu_custom_call.1} parent=0
    #allocation2 [shape = 'u8[16384]{0}', space=vmem, size = 0x4000, scoped, tag = 'input window, operand 0, single buffered']
    #allocation3 [shape = 's32[1]{0}', space=sflag, size = 0x4, scoped, tag = 'scoped memory for tpu_custom_call.1']
    #allocation4 [shape = 's32[1]{0}', space=sflag, size = 0x4, scoped, tag = 'scoped memory for tpu_custom_call.1']
    #allocation5 [shape = 'u8[262144]{0}', space=vmem, size = 0x40000, scoped, tag = 'input window, operand 1, single buffered']
    #allocation6 [shape = 's32[1]{0}', space=sflag, size = 0x4, scoped, tag = 'scoped memory for tpu_custom_call.1']
    #allocation7 [shape = 'u8[16384]{0}', space=vmem, size = 0x4000, scoped, tag = 'output window, operand 0, single buffered']
    %8 = vsyncpa [#allocation3], 0
    %9 = vsyncpa [#allocation6], 0
    %10 = vsyncpa [#allocation4], 0
    // Predicated region
    $region2: #{tpu_custom_call.1} parent=1 // pred_check
      _
    $region3: #{tpu_custom_call.1} parent=1 // pred_check_branch
      %12 = sbr.rel (0) target = $region5
    $region4: #{tpu_custom_call.1} parent=1 // pred_region
      %s14 = ssub.s32 512, 512
      %15 = vsyncadd [#allocation3], %s14
      %s16 = sshll.u32 [#allocation2], 4
      %s17 = int_to_ptr.vmem [resolvable:$true] %s16
      %22 = dma.hbm_to_vmem [thread:$0]  %s0, 512, %s17, [#allocation3], 256, 256, 16
    $region5: #{tpu_custom_call.1} parent=1 // pred_fallthru
      _
    // Predicated region
    $region6: #{tpu_custom_call.1} parent=1 // pred_check
      _
    $region7: #{tpu_custom_call.1} parent=1 // pred_check_branch
      %24 = sbr.rel (0) target = $region9
    $region8: #{tpu_custom_call.1} parent=1 // pred_region
      %s26 = ssub.s32 8192, 8192
      %27 = vsyncadd [#allocation6], %s26
      %s28 = sshll.u32 [#allocation5], 4
      %s29 = int_to_ptr.vmem [resolvable:$true] %s28
      %34 = dma.hbm_to_vmem [thread:$0]  %s1, 8192, %s29, [#allocation6], 256, 256, 16
    $region9: #{tpu_custom_call.1} parent=1 // pred_fallthru
      _
    // Predicated region
    $region10: #{tpu_custom_call.1} parent=1 // pred_check
      _
    $region11: #{tpu_custom_call.1} parent=1 // pred_check_branch
      %36 = sbr.rel (0) target = $region13
    $region12: #{tpu_custom_call.1} parent=1 // pred_region
      _
    $region13: #{tpu_custom_call.1} parent=1 // pred_fallthru
      _
    // Predicated region
    $region14: #{tpu_custom_call.1} parent=1 // pred_check
      _
    $region15: #{tpu_custom_call.1} parent=1 // pred_check_branch
      %38 = sbr.rel (0) target = $region17
    $region16: #{tpu_custom_call.1} parent=1 // pred_region
      %39 = dma.done [#allocation3], 512
    $region17: #{tpu_custom_call.1} parent=1 // pred_fallthru
      _
    // Predicated region
    $region18: #{tpu_custom_call.1} parent=1 // pred_check
      _
    $region19: #{tpu_custom_call.1} parent=1 // pred_check_branch
      %41 = sbr.rel (0) target = $region21
    $region20: #{tpu_custom_call.1} parent=1 // pred_region
      %42 = dma.done [#allocation6], 8192
    $region21: #{tpu_custom_call.1} parent=1 // pred_fallthru
      _
    %v43 = vld [vmem:[#allocation2] sm:$0xff]
    %v44 = vld [vmem:[#allocation2 + $0x8] sm:$0xff]
    %v45 = vld [vmem:[#allocation2 + $0x10] sm:$0xff]
    %v46 = vld [vmem:[#allocation2 + $0x18] sm:$0xff]
    %v47 = vld [vmem:[#allocation5] sm:$0xff]
    %v48 = vld [vmem:[#allocation5 + $0x8] sm:$0xff]
    %v49 = vld [vmem:[#allocation5 + $0x10] sm:$0xff]
    %v50 = vld [vmem:[#allocation5 + $0x18] sm:$0xff]
    %v51 = vld [vmem:[#allocation5 + $0x20] sm:$0xff]
    %v52 = vld [vmem:[#allocation5 + $0x28] sm:$0xff]
    %v53 = vld [vmem:[#allocation5 + $0x30] sm:$0xff]
    %v54 = vld [vmem:[#allocation5 + $0x38] sm:$0xff]
    %v55 = vld [vmem:[#allocation5 + $0x40] sm:$0xff]
    %v56 = vld [vmem:[#allocation5 + $0x48] sm:$0xff]
    %v57 = vld [vmem:[#allocation5 + $0x50] sm:$0xff]
    %v58 = vld [vmem:[#allocation5 + $0x58] sm:$0xff]
    %v59 = vld [vmem:[#allocation5 + $0x60] sm:$0xff]
    %v60 = vld [vmem:[#allocation5 + $0x68] sm:$0xff]
    %v61 = vld [vmem:[#allocation5 + $0x70] sm:$0xff]
    %v62 = vld [vmem:[#allocation5 + $0x78] sm:$0xff]
    %v63 = vld [vmem:[#allocation5 + $0x80] sm:$0xff]
    %v64 = vld [vmem:[#allocation5 + $0x88] sm:$0xff]
    %v65 = vld [vmem:[#allocation5 + $0x90] sm:$0xff]
    %v66 = vld [vmem:[#allocation5 + $0x98] sm:$0xff]
    %v67 = vld [vmem:[#allocation5 + $0xa0] sm:$0xff]
    %v68 = vld [vmem:[#allocation5 + $0xa8] sm:$0xff]
    %v69 = vld [vmem:[#allocation5 + $0xb0] sm:$0xff]
    %v70 = vld [vmem:[#allocation5 + $0xb8] sm:$0xff]
    %v71 = vld [vmem:[#allocation5 + $0xc0] sm:$0xff]
    %v72 = vld [vmem:[#allocation5 + $0xc8] sm:$0xff]
    %v73 = vld [vmem:[#allocation5 + $0xd0] sm:$0xff]
    %v74 = vld [vmem:[#allocation5 + $0xd8] sm:$0xff]
    %v75 = vld [vmem:[#allocation5 + $0xe0] sm:$0xff]
    %v76 = vld [vmem:[#allocation5 + $0xe8] sm:$0xff]
    %v77 = vld [vmem:[#allocation5 + $0xf0] sm:$0xff]
    %v78 = vld [vmem:[#allocation5 + $0xf8] sm:$0xff]
    %v79 = vld [vmem:[#allocation5 + $0x100] sm:$0xff]
    %v80 = vld [vmem:[#allocation5 + $0x108] sm:$0xff]
    %v81 = vld [vmem:[#allocation5 + $0x110] sm:$0xff]
    %v82 = vld [vmem:[#allocation5 + $0x118] sm:$0xff]
    %v83 = vld [vmem:[#allocation5 + $0x120] sm:$0xff]
    %v84 = vld [vmem:[#allocation5 + $0x128] sm:$0xff]
    %v85 = vld [vmem:[#allocation5 + $0x130] sm:$0xff]
    %v86 = vld [vmem:[#allocation5 + $0x138] sm:$0xff]
    %v87 = vld [vmem:[#allocation5 + $0x140] sm:$0xff]
    %v88 = vld [vmem:[#allocation5 + $0x148] sm:$0xff]
    %v89 = vld [vmem:[#allocation5 + $0x150] sm:$0xff]
    %v90 = vld [vmem:[#allocation5 + $0x158] sm:$0xff]
    %v91 = vld [vmem:[#allocation5 + $0x160] sm:$0xff]
    %v92 = vld [vmem:[#allocation5 + $0x168] sm:$0xff]
    %v93 = vld [vmem:[#allocation5 + $0x170] sm:$0xff]
    %v94 = vld [vmem:[#allocation5 + $0x178] sm:$0xff]
    %v95 = vld [vmem:[#allocation5 + $0x180] sm:$0xff]
    %v96 = vld [vmem:[#allocation5 + $0x188] sm:$0xff]
    %v97 = vld [vmem:[#allocation5 + $0x190] sm:$0xff]
    %v98 = vld [vmem:[#allocation5 + $0x198] sm:$0xff]
    %v99 = vld [vmem:[#allocation5 + $0x1a0] sm:$0xff]
    %v100 = vld [vmem:[#allocation5 + $0x1a8] sm:$0xff]
    %v101 = vld [vmem:[#allocation5 + $0x1b0] sm:$0xff]
    %v102 = vld [vmem:[#allocation5 + $0x1b8] sm:$0xff]
    %v103 = vld [vmem:[#allocation5 + $0x1c0] sm:$0xff]
    %v104 = vld [vmem:[#allocation5 + $0x1c8] sm:$0xff]
    %v105 = vld [vmem:[#allocation5 + $0x1d0] sm:$0xff]
    %v106 = vld [vmem:[#allocation5 + $0x1d8] sm:$0xff]
    %v107 = vld [vmem:[#allocation5 + $0x1e0] sm:$0xff]
    %v108 = vld [vmem:[#allocation5 + $0x1e8] sm:$0xff]
    %v109 = vld [vmem:[#allocation5 + $0x1f0] sm:$0xff]
    %v110 = vld [vmem:[#allocation5 + $0x1f8] sm:$0xff]
    %111 = vmatprep.subr.mxu0 %v48
    %112 = vmatpush1.xpose.msra.mxu0 %v47
    %113 = vmatprep.subr.mxu0 %v50
    %114 = vmatpush1.xpose.msra.mxu0 %v49
    %115 = vmatprep.subr.mxu0 %v52
    %116 = vmatpush1.xpose.msra.mxu0 %v51
    %117 = vmatprep.subr.mxu0 %v54
    %118 = vmatpush1.xpose.msra.mxu0 %v53
    %119 = vmatprep.subr.mxu0 %v56
    %120 = vmatpush1.xpose.msra.mxu0 %v55
    %121 = vmatprep.subr.mxu0 %v58
    %122 = vmatpush1.xpose.msra.mxu0 %v57
    %123 = vmatprep.subr.mxu0 %v60
    %124 = vmatpush1.xpose.msra.mxu0 %v59
    %125 = vmatprep.subr.mxu0 %v62
    %126 = vmatpush1.xpose.msra.mxu0 %v61
    %127 = vmatprep.subr.mxu0 %v64
    %128 = vmatpush1.xpose.msra.mxu0 %v63
    %129 = vmatprep.subr.mxu0 %v66
    %130 = vmatpush1.xpose.msra.mxu0 %v65
    %131 = vmatprep.subr.mxu0 %v68
    %132 = vmatpush1.xpose.msra.mxu0 %v67
    %133 = vmatprep.subr.mxu0 %v70
    %134 = vmatpush1.xpose.msra.mxu0 %v69
    %135 = vmatprep.subr.mxu0 %v72
    %136 = vmatpush1.xpose.msra.mxu0 %v71
    %137 = vmatprep.subr.mxu0 %v74
    %138 = vmatpush1.xpose.msra.mxu0 %v73
    %139 = vmatprep.subr.mxu0 %v76
    %140 = vmatpush1.xpose.msra.mxu0 %v75
    %141 = vmatprep.subr.mxu0 %v78
    %142 = vmatpush1.xpose.msra.mxu0 %v77
    %143 = vmatprep.subr.mxu0 %v80
    %144 = vmatpush1.xpose.msra.mxu0 %v79
    %145 = vmatprep.subr.mxu0 %v82
    %146 = vmatpush1.xpose.msra.mxu0 %v81
    %147 = vmatprep.subr.mxu0 %v84
    %148 = vmatpush1.xpose.msra.mxu0 %v83
    %149 = vmatprep.subr.mxu0 %v86
    %150 = vmatpush1.xpose.msra.mxu0 %v85
    %151 = vmatprep.subr.mxu0 %v88
    %152 = vmatpush1.xpose.msra.mxu0 %v87
    %153 = vmatprep.subr.mxu0 %v90
    %154 = vmatpush1.xpose.msra.mxu0 %v89
    %155 = vmatprep.subr.mxu0 %v92
    %156 = vmatpush1.xpose.msra.mxu0 %v91
    %157 = vmatprep.subr.mxu0 %v94
    %158 = vmatpush1.xpose.msra.mxu0 %v93
    %159 = vmatprep.subr.mxu0 %v96
    %160 = vmatpush1.xpose.msra.mxu0 %v95
    %161 = vmatprep.subr.mxu0 %v98
    %162 = vmatpush1.xpose.msra.mxu0 %v97
    %163 = vmatprep.subr.mxu0 %v100
    %164 = vmatpush1.xpose.msra.mxu0 %v99
    %165 = vmatprep.subr.mxu0 %v102
    %166 = vmatpush1.xpose.msra.mxu0 %v101
    %167 = vmatprep.subr.mxu0 %v104
    %168 = vmatpush1.xpose.msra.mxu0 %v103
    %169 = vmatprep.subr.mxu0 %v106
    %170 = vmatpush1.xpose.msra.mxu0 %v105
    %171 = vmatprep.subr.mxu0 %v108
    %172 = vmatpush1.xpose.msra.mxu0 %v107
    %173 = vmatprep.subr.mxu0 %v110
    %174 = vmatpush1.xpose.msra.mxu0 %v109
    %175 = vmatprep.mubr.f32.mxu0 %v44
    %176 = vmatmul.mubr.f32.gmra.mrb[0].mxu0 %v43
    %v177 = vpop.f32.mrb[0].mxu0
    %v178 = vadd.f32 0.0, %v177
    %v179 = vpop.f32.mrb[0].mxu0
    %v180 = vadd.f32 0.0, %v179
    %181 = vmatprep.mubr.f32.mxu0 %v46
    %182 = vmatmul.mubr.f32.gmra.mrb[0].mxu0 %v45
    %v183 = vpop.f32.mrb[0].mxu0
    %v184 = vadd.f32 0.0, %v183
    %v185 = vpop.f32.mrb[0].mxu0
    %v186 = vadd.f32 0.0, %v185
    %187 = vdwg.mxu0
    %v188 = vadd.f32 %v43, %v178
    %v189 = vadd.f32 %v44, %v180
    %v190 = vadd.f32 %v45, %v184
    %v191 = vadd.f32 %v46, %v186
    %v192 = vld [vmem:[%s2] sm:$0x3]
    %v194 = vlaneseq
    %v195 = vshrl.u32 %v194, 7
    %v196 = vsub.s32 0, %v195
    %v197 = vrot.slane %v192, %v196
    %v198 = vlaneseq
    %v199 = vshrl.u32 %v198, 7
    %v200 = vsub.s32 1, %v199
    %v201 = vrot.slane %v192, %v200
    %v204 = vadd.f32 %v188, %v197
    %v205 = vadd.f32 %v189, %v201
    %v206 = vadd.f32 %v190, %v197
    %v207 = vadd.f32 %v191, %v201
    %208 = vst [vmem:[#allocation7] sm:$0xff] %v204
    %209 = vst [vmem:[#allocation7 + $0x8] sm:$0xff] %v205
    %210 = vst [vmem:[#allocation7 + $0x10] sm:$0xff] %v206
    %211 = vst [vmem:[#allocation7 + $0x18] sm:$0xff] %v207
    // Predicated region
    $region22: #{tpu_custom_call.1} parent=1 // pred_check
      _
    $region23: #{tpu_custom_call.1} parent=1 // pred_check_branch
      %213 = sbr.rel (0) target = $region25
    $region24: #{tpu_custom_call.1} parent=1 // pred_region
      %s215 = ssub.s32 512, 512
      %216 = vsyncadd [#allocation4], %s215
      %s217 = sshll.u32 [#allocation7], 4
      %s218 = int_to_ptr.vmem [resolvable:$true] %s217
      %223 = dma.vmem_to_hbm [thread:$0]  %s218, 512, %s3, [#allocation4], 256, 256, 16
    $region25: #{tpu_custom_call.1} parent=1 // pred_fallthru
      _
    // Predicated region
    $region26: #{tpu_custom_call.1} parent=1 // pred_check
      _
    $region27: #{tpu_custom_call.1} parent=1 // pred_check_branch
      %225 = sbr.rel (0) target = $region29
    $region28: #{tpu_custom_call.1} parent=1 // pred_region
      %226 = dma.done [#allocation4], 512
    $region29: #{tpu_custom_call.1} parent=1 // pred_fallthru
      _
    %227 = vsyncpa [#allocation3], 1
    %228 = vsyncpa [#allocation6], 1
    %229 = vsyncpa [#allocation4], 1

</llo_original>
